<compile_context>
chip_gen: v7x
topology: tpu7x:2x2x1
jax: 0.10.0
libtpu: 0.0.40
codegen_flags: <defaults>
</compile_context>

<pallas_src>
import math

import jax
import jax.numpy as jnp
from jax.experimental import pallas as pl
from jax.experimental.pallas import tpu as pltpu


# Default tile caps (multiples of 256; working set ~20 MiB at the maximum).
_TM_CAP = 512
_TK_CAP = 2048
_TN_CAP = 1024


# ---------------------------------------------------------------------------
# Kernels
# ---------------------------------------------------------------------------

def _linear_kernel_noacc(x_ref, w_ref, b_ref, o_ref):
    """Single-K-tile path: O = X @ W_scaled + b (scale pre-folded into W)."""
    acc = jnp.dot(x_ref[...], w_ref[...], preferred_element_type=jnp.float32)
    o_ref[...] = (acc + b_ref[...]).astype(o_ref.dtype)


def _linear_kernel_acc(x_ref, w_ref, b_ref, o_ref, acc_ref):
    """K-reduction path: accumulate into f32 VMEM scratch across grid axis 2."""
    k = pl.program_id(2)
    prod = jnp.dot(x_ref[...], w_ref[...], preferred_element_type=jnp.float32)

    @pl.when(k == 0)
    def _first():
        acc_ref[...] = prod                      # write-first: no zero-init + RMW

    @pl.when(k > 0)
    def _accumulate():
        acc_ref[...] = acc_ref[...] + prod

    @pl.when(k == pl.num_programs(2) - 1)
    def _finalize():
        o_ref[...] = (acc_ref[...] + b_ref[...]).astype(o_ref.dtype)


# ---------------------------------------------------------------------------
# Tiling helpers
# ---------------------------------------------------------------------------

def _cdiv(a, b):
    return -(-a // b)


def _round_up(x, m):
    return _cdiv(x, m) * m


def _plan(dim, cap, align):
    """Waste-free tiling: g = cdiv(dim, cap); tile = round_up(cdiv(dim, g), align).

    Padding is at most one alignment unit per tile (vs. round_up(dim, cap))."""
    g = _cdiv(dim, cap)
    t = _round_up(_cdiv(dim, g), align)
    return t, g, t * g


def _smallest_divisor_ge2(n):
    for d in range(2, int(n ** 0.5) + 1):
        if n % d == 0:
            return d
    return n


# ---------------------------------------------------------------------------
# Wrapper
# ---------------------------------------------------------------------------

def _pad_weight_bias(w, b, n_in, *, compute_dtype, tk_cap, tn_cap):
    """Fold 1/sqrt(n_in) into W, cast to compute_dtype, pad to the tile plan."""
    K, N = w.shape
    scale = 1.0 / math.sqrt(n_in)
    _, _, K_pad = _plan(K, tk_cap, 128)
    _, _, N_pad = _plan(N, tn_cap, 128)
    # Scale-before-cast matches the torch W / sqrt(n_in)-before-mm order and
    # removes the per-tile epilogue multiply from the kernel.
    w_p = jnp.pad((w * scale).astype(compute_dtype),
                  ((0, K_pad - K), (0, N_pad - N)))
    b_p = jnp.pad(b.astype(jnp.float32), (0, N_pad - N)).reshape(1, N_pad)
    return w_p, b_p


def _matmul_padded(x, w_p, b_p, n_out, *, compute_dtype, tm_cap, tk_cap, tn_cap):
    """Y = X @ W_padded + b_padded with W already scaled/padded/cast."""
    M, K = x.shape
    N = n_out
    out_dtype = x.dtype

    align_m = 16 if jnp.dtype(compute_dtype) == jnp.dtype(jnp.bfloat16) else 8
    tm, gm, M_pad = _plan(M, tm_cap, align_m)
    tk, gk, K_pad = _plan(K, tk_cap, 128)
    tn, gn, N_pad = _plan(N, tn_cap, 128)
    assert w_p.shape == (K_pad, N_pad), (w_p.shape, (K_pad, N_pad))
    assert b_p.shape == (1, N_pad), (b_p.shape, (1, N_pad))

    # v7x megacore: guarantee >= 2 parallel grid tiles whenever possible so the
    # ("parallel", "parallel", ...) axes can be sharded across the 2 TCs/chip.
    if gm * gn == 1:
        lane_blocks = N_pad // 128
        if lane_blocks >= 2:
            gn = _smallest_divisor_ge2(lane_blocks)
            tn = N_pad // gn                     # stays a multiple of 128
        elif M_pad >= 2 * align_m:
            gm = 2
            tm = _round_up(_cdiv(M, 2), align_m)
            M_pad = gm * tm

    x_p = jnp.pad(x.astype(compute_dtype), ((0, M_pad - M), (0, K_pad - K)))

    # VMEM budget from the actual double-buffered tiles, capped v7x-safe.
    in_bytes = jnp.dtype(compute_dtype).itemsize
    out_bytes = jnp.dtype(out_dtype).itemsize
    working = (2 * tm * tk * in_bytes            # X tiles (double-buffered)
               + 2 * tk * tn * in_bytes          # W tiles
               + 2 * tm * tn * out_bytes         # output tiles
               + 2 * 8 * tn * 4)                 # bias tiles (sublane-padded)
    if gk > 1:
        working += tm * tn * 4                   # f32 accumulator scratch
    vmem_limit = int(min(28 * 2 ** 20, max(working + (2 << 20), 8 * 2 ** 20)))

    if gk == 1:
        grid = (gm, gn)
        in_specs = [
            pl.BlockSpec((tm, tk), lambda i, j: (i, 0)),   # X tile
            pl.BlockSpec((tk, tn), lambda i, j: (0, j)),   # W tile
            pl.BlockSpec((1, tn), lambda i, j: (0, j)),    # bias tile
        ]
        out_spec = pl.BlockSpec((tm, tn), lambda i, j: (i, j))
        kernel = _linear_kernel_noacc
        scratch_shapes = []
        dim_sem = ("parallel", "parallel")
    else:
        grid = (gm, gn, gk)
        in_specs = [
            pl.BlockSpec((tm, tk), lambda i, j, k: (i, k)),
            pl.BlockSpec((tk, tn), lambda i, j, k: (k, j)),
            pl.BlockSpec((1, tn), lambda i, j, k: (0, j)),
        ]
        out_spec = pl.BlockSpec((tm, tn), lambda i, j, k: (i, j))
        kernel = _linear_kernel_acc
        scratch_shapes = [pltpu.VMEM((tm, tn), jnp.float32)]
        dim_sem = ("parallel", "parallel", "arbitrary")

    out = pl.pallas_call(
        kernel,
        out_shape=jax.ShapeDtypeStruct((M_pad, N_pad), out_dtype),
        grid_spec=pltpu.PrefetchScalarGridSpec(
            num_scalar_prefetch=0,
            grid=grid,
            in_specs=in_specs,
            out_specs=out_spec,
            scratch_shapes=scratch_shapes,
        ),
        compiler_params=pltpu.CompilerParams(
            dimension_semantics=dim_sem,
            vmem_limit_bytes=vmem_limit,
        ),
    )(x_p, w_p, b_p)

    return out[:M, :N]


def row_fix_linear_matmul(x, w, b, n_in, *, compute_dtype=jnp.bfloat16,
                          tm_cap=_TM_CAP, tk_cap=_TK_CAP, tn_cap=_TN_CAP):
    """Y = X @ (W / sqrt(n_in)) + b via the tiled Pallas TPU kernel."""
    w_p, b_p = _pad_weight_bias(w, b, n_in, compute_dtype=compute_dtype,
                                tk_cap=tk_cap, tn_cap=tn_cap)
    return _matmul_padded(x, w_p, b_p, w.shape[1], compute_dtype=compute_dtype,
                          tm_cap=tm_cap, tk_cap=tk_cap, tn_cap=tn_cap)


# ---------------------------------------------------------------------------
# Row_Fix_Linear port (parameter glue in plain JAX; matmul in Pallas)
# ---------------------------------------------------------------------------

class RowFixLinear:
    """JAX/Pallas port of Row_Fix_Linear."""

    def __init__(self, key, n_in, n_out, fc1_W=None, num_fix_ratio=None,
                 descending=None, *, compute_dtype=jnp.bfloat16,
                 tm_cap=_TM_CAP, tk_cap=_TK_CAP, tn_cap=_TN_CAP):
        self.n_in = n_in
        self.n_out = n_out
        self.fc1_W = fc1_W
        self._compute_dtype = compute_dtype
        self._caps = (tm_cap, tk_cap, tn_cap)
        if fc1_W is None:
            w_shape = (n_in, n_out)
        else:
            self.num_fix = int(n_out * num_fix_ratio)
            self.descending = descending
            w_shape = (n_in, self.num_fix)
            # fc1_W is static, so the column-norm sort, fixed-column mask and
            # non-fixed column list are constants (hoisted out of __call__).
            norm_W = jnp.linalg.norm(fc1_W, axis=0)
            order = jnp.argsort(-norm_W) if descending else jnp.argsort(norm_W)
            fixed_cols = order[:self.num_fix]
            self._full_fc1_W = (jnp.ones_like(fc1_W)
                                .at[:, fixed_cols].set(fc1_W[:, fixed_cols]))
            is_fixed = (jnp.zeros((n_out,), dtype=bool)
                        .at[fixed_cols].set(True))
            self._nonfix_cols = jnp.where(
                ~is_fixed, size=n_out - self.num_fix)[0]
        # reset_parameters(): W ~ N(0, std=1), b = 0 (deterministic via key).
        self.W = jax.random.normal(key, w_shape, dtype=jnp.float32)
        self.b = jnp.zeros((n_out,), dtype=jnp.float32)
        # Cache the scaled / padded / bf16 weight once — removes the per-call
        # scatter + pad + cast (an extra full HBM read+write of the weight).
        self._refresh_weight_cache()

    def _refresh_weight_cache(self):
        """Recompute the cached padded weight/bias (call again if W or b change)."""
        _, tk_cap, tn_cap = self._caps
        self._w_p, self._b_p = _pad_weight_bias(
            self.build_weight(), self.b, self.n_in,
            compute_dtype=self._compute_dtype, tk_cap=tk_cap, tn_cap=tn_cap)

    def build_weight(self):
        """Reproduces `new_W[sampling_indices] = W.flatten()` from the torch code.

        Equivalent to the PyTorch boolean-mask scatter provided fc1_W has no
        entries exactly equal to 1.0 and num_fix_ratio == 0.5 — the only
        configuration in which the original scatter is well-posed.
        """
        if self.fc1_W is None:
            return self.W
        # TODO(synk): other num_fix_ratio values make the torch mask-scatter
        # itself ill-posed (flatten length mismatch); not reproduced here.
        return self._full_fc1_W.at[:, self._nonfix_cols].set(self.W)

    def __call__(self, X):
        tm_cap, tk_cap, tn_cap = self._caps
        return _matmul_padded(X, self._w_p, self._b_p, self.n_out,
                              compute_dtype=self._compute_dtype,
                              tm_cap=tm_cap, tk_cap=tk_cap, tn_cap=tn_cap)


# ---------------------------------------------------------------------------
# Self-test
# ---------------------------------------------------------------------------

if __name__ == "__main__":
    key = jax.random.PRNGKey(0)
    k_x, k_w1, k_w2, k_fc1, k_x3, k_w3 = jax.random.split(key, 6)

    # --- mode 1: fc1_W is None (plain row-scaled linear). n_out=256 also
    #     exercises the v7x megacore N-split (grid (1,2), lane-dense tiles) ---
    M, n_in, n_out = 8, 32, 256
    x = jax.random.normal(k_x, (M, n_in), dtype=jnp.float32)
    layer = RowFixLinear(k_w1, n_in, n_out)
    y = jax.block_until_ready(layer(x))
    y_ref = x @ (layer.build_weight() / math.sqrt(n_in)) + layer.b
    assert y.shape == (M, n_out)
    assert jnp.allclose(y, y_ref, atol=5e-2, rtol=5e-2)

    # --- mode 2: fc1_W provided, half of the columns fixed ---
    n_out2 = 64
    fc1_W = jax.random.normal(k_fc1, (n_in, n_out2), dtype=jnp.float32)
    layer_fix = RowFixLinear(k_w2, n_in, n_out2, fc1_W=fc1_W,
                             num_fix_ratio=0.5, descending=True)
    y_fix = jax.block_until_ready(layer_fix(x))
    y_fix_ref = x @ (layer_fix.build_weight() / math.sqrt(n_in)) + layer_fix.b
    assert y_fix.shape == (M, n_out2)
    assert jnp.allclose(y_fix, y_fix_ref, atol=5e-2, rtol=5e-2)

    # --- mode 3: small shapes with tiny tile caps to exercise the multi-block
    #     grid, padding, and the K-reduction accumulator path ---
    M3, K3, N3 = 96, 320, 384
    x3 = jax.random.normal(k_x3, (M3, K3), dtype=jnp.float32)
    w3 = jax.random.normal(k_w3, (K3, N3), dtype=jnp.float32)
    b3 = jnp.full((N3,), 0.5, dtype=jnp.float32)
    y3 = jax.block_until_ready(row_fix_linear_matmul(
        x3, w3, b3, K3, tm_cap=64, tk_cap=128, tn_cap=128))
    y3_ref = x3 @ (w3 / math.sqrt(K3)) + b3
    assert y3.shape == (M3, N3)
    assert jnp.allclose(y3, y3_ref, atol=5e-2, rtol=5e-2)

    print("KERNEL_OK")
</pallas_src>

<mosaic_0001>
module attributes {stable_mosaic.version = 11 : i64} {
  func.func @_linear_kernel_noacc(%arg0: i32, %arg1: i32, %arg2: memref<16x128xbf16, #tpu.memory_space<vmem>>, %arg3: memref<128x128xbf16, #tpu.memory_space<vmem>>, %arg4: memref<1x128xf32, #tpu.memory_space<vmem>>, %arg5: memref<16x128xf32, #tpu.memory_space<vmem>>) attributes {dimension_semantics = [#tpu.dimension_semantics<parallel>, #tpu.dimension_semantics<parallel>], iteration_bounds = array<i64: 1, 2>, scalar_prefetch = 0 : i64, scratch_operands = 0 : i64, tpu.core_type = #tpu.core_type<tc>, window_params = [{transform_indices = @transform_0, window_bounds = array<i64: 16, 128>}, {transform_indices = @transform_1, window_bounds = array<i64: 128, 128>}, {transform_indices = @transform_2, window_bounds = array<i64: 1, 128>}, {transform_indices = @transform_3, window_bounds = array<i64: 16, 128>}]} {
    %c0 = arith.constant 0 : index
    %c0_0 = arith.constant 0 : index
    %0 = vector.load %arg2[%c0, %c0_0] : memref<16x128xbf16, #tpu.memory_space<vmem>>, vector<16x128xbf16>
    %c0_1 = arith.constant 0 : index
    %c0_2 = arith.constant 0 : index
    %1 = vector.load %arg3[%c0_1, %c0_2] : memref<128x128xbf16, #tpu.memory_space<vmem>>, vector<128x128xbf16>
    %cst = arith.constant dense<0.000000e+00> : vector<16x128xf32>
    %2 = tpu.matmul %0, %1, %cst {dimension_numbers = #tpu.dot_dimension_numbers<[1], [0], [0], [1], [0, 0, 1, 1], [], []>} : vector<16x128xbf16>, vector<128x128xbf16>, vector<16x128xf32> -> vector<16x128xf32>
    %c0_3 = arith.constant 0 : index
    %c0_4 = arith.constant 0 : index
    %3 = vector.load %arg4[%c0_3, %c0_4] : memref<1x128xf32, #tpu.memory_space<vmem>>, vector<1x128xf32>
    %4 = vector.broadcast %3 : vector<1x128xf32> to vector<16x128xf32>
    %5 = arith.addf %2, %4 : vector<16x128xf32>
    %c0_5 = arith.constant 0 : index
    %c0_6 = arith.constant 0 : index
    %6 = vector.load %arg5[%c0_5, %c0_6] : memref<16x128xf32, #tpu.memory_space<vmem>>, vector<16x128xf32>
    tpu.vector_store %arg5[%c0_5, %c0_6], %5 {strides = array<i32>} : memref<16x128xf32, #tpu.memory_space<vmem>>, vector<16x128xf32>,
    return
  }
  func.func @transform_0(%arg0: i32, %arg1: i32) -> (i32, i32) {
    %c0_i32 = arith.constant 0 : i32
    %c0_i32_0 = arith.constant 0 : i32
    return %arg0, %c0_i32 : i32, i32
  }
  func.func @transform_1(%arg0: i32, %arg1: i32) -> (i32, i32) {
    %c0_i32 = arith.constant 0 : i32
    %c0_i32_0 = arith.constant 0 : i32
    return %c0_i32, %arg1 : i32, i32
  }
  func.func @transform_2(%arg0: i32, %arg1: i32) -> (i32, i32) {
    %c0_i32 = arith.constant 0 : i32
    %c0_i32_0 = arith.constant 0 : i32
    return %c0_i32, %arg1 : i32, i32
  }
  func.func @transform_3(%arg0: i32, %arg1: i32) -> (i32, i32) {
    %c0_i32 = arith.constant 0 : i32
    return %arg0, %arg1 : i32, i32
  }
}

</mosaic_0001>

<llo_original>
// kernel: tpu_custom_call.1
$region0: #{tpu_custom_call.1}
  #allocation0 [shape = 'u32[]', space=smem, size = 0x4, offset = 0x4, fixed_abs, tag = 'smem constant byte address 0x4 - core index']
  #allocation1 [shape = 'u32[144,128]{1,0:T(1,128)}', space=vmem, size = 0x12000, scoped, tag = 'internal scratch']
  %s0 = inlined_call_operand.hbm [shape: bf16[16,128], index: 0, kind: input, shape index: {}]
  %s1 = inlined_call_operand.hbm [shape: bf16[128,256], index: 1, kind: input, shape index: {}]
  %s2 = inlined_call_operand.vmem [shape: f32[1,256], index: 2, kind: input, shape index: {}]
  %s3 = inlined_call_operand.hbm [shape: f32[16,256], index: 3, kind: output, shape index: {}]
  %s4 = sld [smem:[#allocation0]]
  $region53: #{tpu_custom_call.1} parent=0
    _
  %s6 = ssub.s32 1, %s4
  %s7 = scalar_select 0, %s6, %s4
  $region1: #{tpu_custom_call.1} parent=0
    #allocation2 [shape = 'u8[4096]{0}', space=vmem, size = 0x1000, scoped, tag = 'input window, operand 0, single buffered']
    #allocation3 [shape = 's32[2]{0}', space=sflag, size = 0x8, scoped, tag = 'scoped memory for tpu_custom_call.1']
    #allocation4 [shape = 's32[2]{0}', space=sflag, size = 0x8, scoped, tag = 'scoped memory for tpu_custom_call.1']
    #allocation5 [shape = 'u8[65536]{0}', space=vmem, size = 0x10000, scoped, tag = 'input window, operand 1']
    #allocation6 [shape = 's32[2]{0}', space=sflag, size = 0x8, scoped, tag = 'scoped memory for tpu_custom_call.1']
    #allocation7 [shape = 'u8[16384]{0}', space=vmem, size = 0x4000, scoped, tag = 'output window, operand 0']
    %8 = vsyncpa [#allocation3], 0
    %9 = vsyncpa [#allocation6], 0
    %s10 = scalar_lea.sflag [#allocation6], 1
    %11 = vsyncpa %s10, 0
    %12 = vsyncpa [#allocation4], 0
    %s13 = scalar_lea.sflag [#allocation4], 1
    %14 = vsyncpa %s13, 0
    loop: start=0, step=1, limit=4
    $region2: #{tpu_custom_call.1} parent=1 // loop_pre_header
      _
    $region3: #{tpu_custom_call.1} parent=1 // loop_header
      %s16 = sphi 0, %s20
      %p17 = scmp.ge.s32.totalorder %s16, 4
      %s23 = sphi 0, %s35
      %s24 = sphi 0, %s31
      %s25 = sphi 0, %s23
      %s26 = sphi 0, %s24
      %s27 = sphi 0, %s25
      %s28 = sphi 0, %s26
      %s38 = sphi 0, %s40
      %s41 = sphi 0, %s38
      %s42 = sphi 0, %s41
      %s58 = sphi 0, %s42
      %s64 = sphi 0, %s66
      %s67 = sphi 0, %s64
      %s68 = sphi 0, %s67
      %s84 = sphi 0, %s68
      %s90 = sphi 0, %s92
      %s93 = sphi 0, %s90
      %s94 = sphi 0, %s93
      %s110 = sphi 0, %s94
      %s118 = sphi 0, %s120
      %s121 = sphi 0, %s118
      %s122 = sphi 0, %s121
      %s138 = sphi 0, %s122
    $region4: #{tpu_custom_call.1} parent=1 // loop_header_branch
      %19 = sbr.rel (%p17) target = $region8
    $region5: #{tpu_custom_call.1} parent=1 // loop_body
      %s21 = ssub.s32 %s16, 1
      %s22 = ssub.s32 %s16, 2
      %s29 = sadd.s32 1, %s24
      %p30 = scmp.ge.s32.totalorder %s29, 2
      %s31 = scalar_select %p30, 0, %s29
      %s32 = sadd.s32 1, %s23
      %s33 = scalar_select %p30, %s32, %s23
      %p34 = scmp.ge.s32.totalorder %s33, 1
      %s35 = scalar_select %p34, 0, %s33
      %s36 = ssub.s32 %s23, %s35
      %p37 = scmp.eq.s32.totalorder %s36, 0
      %s39 = sadd.s32 %s38, 1
      %s40 = scalar_select %p37, %s38, %s39
      %p43 = pneg %p37
      %p44 = scmp.eq.s32.totalorder %s16, 1
      %p45 = por %p43, %p44
      %p46 = scmp.ne.s32.totalorder %s38, %s41
      %p47 = scmp.eq.s32.totalorder %s16, 0
      %p48 = por %p46, %p47
      %p49 = scmp.ne.s32.totalorder %s38, %s41
      %p50 = scmp.eq.s32.totalorder %s21, 1
      %p51 = por %p49, %p50
      %p52 = scmp.ne.s32.totalorder %s41, %s42
      %p53 = scmp.eq.s32.totalorder %s21, 0
      %p54 = por %p52, %p53
      %p55 = scmp.ne.s32.totalorder %s41, %s42
      %p56 = scmp.eq.s32.totalorder %s22, 1
      %p57 = por %p55, %p56
      %p59 = scmp.ne.s32.totalorder %s42, %s58
      %p60 = scmp.eq.s32.totalorder %s22, 0
      %p61 = por %p59, %p60
      %s62 = ssub.s32 %s24, %s31
      %p63 = scmp.eq.s32.totalorder %s62, 0
      %s65 = sadd.s32 %s64, 1
      %s66 = scalar_select %p63, %s64, %s65
      %p69 = pneg %p63
      %p70 = scmp.eq.s32.totalorder %s16, 1
      %p71 = por %p69, %p70
      %p72 = scmp.ne.s32.totalorder %s64, %s67
      %p73 = scmp.eq.s32.totalorder %s16, 0
      %p74 = por %p72, %p73
      %p75 = scmp.ne.s32.totalorder %s64, %s67
      %p76 = scmp.eq.s32.totalorder %s21, 1
      %p77 = por %p75, %p76
      %p78 = scmp.ne.s32.totalorder %s67, %s68
      %p79 = scmp.eq.s32.totalorder %s21, 0
      %p80 = por %p78, %p79
      %p81 = scmp.ne.s32.totalorder %s67, %s68
      %p82 = scmp.eq.s32.totalorder %s22, 1
      %p83 = por %p81, %p82
      %p85 = scmp.ne.s32.totalorder %s68, %s84
      %p86 = scmp.eq.s32.totalorder %s22, 0
      %p87 = por %p85, %p86
      %s88 = ssub.s32 %s24, %s31
      %p89 = scmp.eq.s32.totalorder %s88, 0
      %s91 = sadd.s32 %s90, 1
      %s92 = scalar_select %p89, %s90, %s91
      %p95 = pneg %p89
      %p96 = scmp.eq.s32.totalorder %s16, 1
      %p97 = por %p95, %p96
      %p98 = scmp.ne.s32.totalorder %s90, %s93
      %p99 = scmp.eq.s32.totalorder %s16, 0
      %p100 = por %p98, %p99
      %p101 = scmp.ne.s32.totalorder %s90, %s93
      %p102 = scmp.eq.s32.totalorder %s21, 1
      %p103 = por %p101, %p102
      %p104 = scmp.ne.s32.totalorder %s93, %s94
      %p105 = scmp.eq.s32.totalorder %s21, 0
      %p106 = por %p104, %p105
      %p107 = scmp.ne.s32.totalorder %s93, %s94
      %p108 = scmp.eq.s32.totalorder %s22, 1
      %p109 = por %p107, %p108
      %p111 = scmp.ne.s32.totalorder %s94, %s110
      %p112 = scmp.eq.s32.totalorder %s22, 0
      %p113 = por %p111, %p112
      %s114 = ssub.s32 %s23, %s35
      %s115 = ssub.s32 %s24, %s31
      %s116 = sor.u32 %s114, %s115
      %p117 = scmp.eq.s32.totalorder %s116, 0
      %s119 = sadd.s32 %s118, 1
      %s120 = scalar_select %p117, %s118, %s119
      %p123 = pneg %p117
      %p124 = scmp.eq.s32.totalorder %s16, 1
      %p125 = por %p123, %p124
      %p126 = scmp.ne.s32.totalorder %s118, %s121
      %p127 = scmp.eq.s32.totalorder %s16, 0
      %p128 = por %p126, %p127
      %p129 = scmp.ne.s32.totalorder %s118, %s121
      %p130 = scmp.eq.s32.totalorder %s21, 1
      %p131 = por %p129, %p130
      %p132 = scmp.ne.s32.totalorder %s121, %s122
      %p133 = scmp.eq.s32.totalorder %s21, 0
      %p134 = por %p132, %p133
      %p135 = scmp.ne.s32.totalorder %s121, %s122
      %p136 = scmp.eq.s32.totalorder %s22, 1
      %p137 = por %p135, %p136
      %p139 = scmp.ne.s32.totalorder %s122, %s138
      %p140 = scmp.eq.s32.totalorder %s22, 0
      %p141 = por %p139, %p140
      %p142 = scmp.le.s32.totalorder 1, %s16
      %p143 = scmp.lt.s32.totalorder %s16, 3
      %p144 = pnand %p142, %p143
      %p145 = pneg %p144
      // Predicated region
      $region9: #{tpu_custom_call.1} parent=5 // pred_check
        _
      $region10: #{tpu_custom_call.1} parent=5 // pred_check_branch
        %147 = sbr.rel (%p144) target = $region12
      $region11: #{tpu_custom_call.1} parent=5 // pred_region
        %s148 = ssub.s32 %s16, 1
        // Predicated region
        $region13: #{tpu_custom_call.1} parent=11 // pred_check
          %p149 = pneg %p54
        $region14: #{tpu_custom_call.1} parent=11 // pred_check_branch
          %151 = sbr.rel (%p149) target = $region16
        $region15: #{tpu_custom_call.1} parent=11 // pred_region
          %s152 = smul.u32 2, %s25
          %s154 = ssub.s32 128, 128
          %155 = vsyncadd [#allocation3], %s154
          %s156 = smul.addr %s152, 64
          %s157 = scalar_lea.hbm %s0, %s156
          %s158 = sshll.u32 [#allocation2], 4
          %s159 = int_to_ptr.vmem [resolvable:$true] %s158
          %164 = dma.hbm_to_vmem [thread:$0]  %s157, 128, %s159, [#allocation3], 64, 64, 4
        $region16: #{tpu_custom_call.1} parent=11 // pred_fallthru
          _
      $region12: #{tpu_custom_call.1} parent=5 // pred_fallthru
        _
      %p165 = scmp.lt.s32.totalorder %s16, 2
      // Predicated region
      $region17: #{tpu_custom_call.1} parent=5 // pred_check
        %p166 = pneg %p165
      $region18: #{tpu_custom_call.1} parent=5 // pred_check_branch
        %168 = sbr.rel (%p166) target = $region20
      $region19: #{tpu_custom_call.1} parent=5 // pred_region
        // Predicated region
        $region21: #{tpu_custom_call.1} parent=19 // pred_check
          %p169 = pneg %p74
        $region22: #{tpu_custom_call.1} parent=19 // pred_check_branch
          %171 = sbr.rel (%p169) target = $region24
        $region23: #{tpu_custom_call.1} parent=19 // pred_region
          %s172 = sand.u32 %s64, 1
          %s173 = scalar_lea.sflag [#allocation6], %s172
          %s174 = sand.u32 %s64, 1
          %s175 = smul.addr %s174, 64
          %s176 = scalar_lea.vmem [#allocation5], %s175
          %s178 = ssub.s32 1024, 1024
          %179 = vsyncadd %s173, %s178
          %s180 = smul.addr %s24, 64
          %s181 = scalar_lea.hbm %s1, %s180
          %s182 = sshll.u32 %s176, 4
          %s183 = int_to_ptr.vmem [resolvable:$true] %s182
          %188 = dma.hbm_to_vmem [thread:$0]  %s181, 1024, %s183, %s173, 128, 64, 4
        $region24: #{tpu_custom_call.1} parent=19 // pred_fallthru
          _
        // Predicated region
        $region25: #{tpu_custom_call.1} parent=19 // pred_check
          %p189 = pneg %p100
        $region26: #{tpu_custom_call.1} parent=19 // pred_check_branch
          %191 = sbr.rel (%p189) target = $region28
        $region27: #{tpu_custom_call.1} parent=19 // pred_region
          %p192 = scmp.lt.s32.totalorder %s24, 1
          %s193 = scalar_select %p192, %s24, 1
          %s194 = scalar_lea.vmem %s2, %s193
        $region28: #{tpu_custom_call.1} parent=19 // pred_fallthru
          _
      $region20: #{tpu_custom_call.1} parent=5 // pred_fallthru
        _
      %p195 = scmp.le.s32.totalorder 1, %s16
      %p196 = scmp.lt.s32.totalorder %s16, 3
      %p197 = pnand %p195, %p196
      %p198 = pneg %p197
      // Predicated region
      $region29: #{tpu_custom_call.1} parent=5 // pred_check
        _
      $region30: #{tpu_custom_call.1} parent=5 // pred_check_branch
        %200 = sbr.rel (%p197) target = $region32
      $region31: #{tpu_custom_call.1} parent=5 // pred_region
        %s201 = ssub.s32 %s16, 1
        // Predicated region
        $region33: #{tpu_custom_call.1} parent=31 // pred_check
          %p202 = pneg %p54
        $region34: #{tpu_custom_call.1} parent=31 // pred_check_branch
          %204 = sbr.rel (%p202) target = $region36
        $region35: #{tpu_custom_call.1} parent=31 // pred_region
          %205 = dma.done [#allocation3], 128
        $region36: #{tpu_custom_call.1} parent=31 // pred_fallthru
          _
        %s206 = sand.u32 %s67, 1
        %s207 = scalar_lea.sflag [#allocation6], %s206
        %s208 = sand.u32 %s67, 1
        %s209 = smul.addr %s208, 64
        %s210 = scalar_lea.vmem [#allocation5], %s209
        // Predicated region
        $region37: #{tpu_custom_call.1} parent=31 // pred_check
          %p211 = pneg %p80
        $region38: #{tpu_custom_call.1} parent=31 // pred_check_branch
          %213 = sbr.rel (%p211) target = $region40
        $region39: #{tpu_custom_call.1} parent=31 // pred_region
          %214 = dma.done %s207, 1024
        $region40: #{tpu_custom_call.1} parent=31 // pred_fallthru
          _
        %p215 = pneg %p54
        %p216 = pneg %p51
        %s217 = sand.u32 %s67, 1
        %s218 = scalar_lea.sflag [#allocation6], %s217
        %s219 = sand.u32 %s67, 1
        %s220 = smul.addr %s219, 64
        %s221 = scalar_lea.vmem [#allocation5], %s220
        %p222 = pneg %p80
        %p223 = pneg %p77
        %p224 = scmp.lt.s32.totalorder %s26, 1
        %s225 = scalar_select %p224, %s26, 1
        %s226 = scalar_lea.vmem %s2, %s225
        %p227 = pneg %p106
        %p228 = pneg %p103
        %p229 = pneg %p134
        %p230 = pneg %p131
        %s231 = sand.u32 %s121, 1
        %s232 = scalar_lea.sflag [#allocation4], %s231
        %s233 = sand.u32 %s121, 1
        %s234 = smul.addr %s233, 16
        %s235 = scalar_lea.vmem [#allocation7], %s234
        %s236 = smul.u32 2, %s25
        %p237 = scmp.lt.s32.totalorder %s26, 1
        %s238 = scalar_select %p237, %s26, 1
        %s239 = scalar_lea.vmem %s2, %s238
        %s240 = smul.u32 2, %s25
        %v242 = vld [vmem:[#allocation2] sm:$0xf]
        %v243 = vld [vmem:[#allocation2 + $0x4] sm:$0xf]
        %v244 = vld [vmem:[%s210] sm:$0xf]
        %v245 = vld [vmem:[%s210 + $0x4] sm:$0xf]
        %v246 = vld [vmem:[%s210 + $0x8] sm:$0xf]
        %v247 = vld [vmem:[%s210 + $0xc] sm:$0xf]
        %v248 = vld [vmem:[%s210 + $0x10] sm:$0xf]
        %v249 = vld [vmem:[%s210 + $0x14] sm:$0xf]
        %v250 = vld [vmem:[%s210 + $0x18] sm:$0xf]
        %v251 = vld [vmem:[%s210 + $0x1c] sm:$0xf]
        %v252 = vld [vmem:[%s210 + $0x20] sm:$0xf]
        %v253 = vld [vmem:[%s210 + $0x24] sm:$0xf]
        %v254 = vld [vmem:[%s210 + $0x28] sm:$0xf]
        %v255 = vld [vmem:[%s210 + $0x2c] sm:$0xf]
        %v256 = vld [vmem:[%s210 + $0x30] sm:$0xf]
        %v257 = vld [vmem:[%s210 + $0x34] sm:$0xf]
        %v258 = vld [vmem:[%s210 + $0x38] sm:$0xf]
        %v259 = vld [vmem:[%s210 + $0x3c] sm:$0xf]
        %v260 = vld [vmem:[%s239] sm:$0x1]
        %v262 = vlaneseq
        %v263 = vshrl.u32 %v262, 7
        %v264 = vsub.s32 0, %v263
        %v265 = vrot.slane %v260, %v264
        %v269 = vunpack.c.l.b16 %v242
        %v270 = vunpack.c.l.b16 %v243
        %v271 = vpack.c.b16 %v270, %v269
        %v289 = vunpack.c.l.b16 %v244
        %v290 = vunpack.c.l.b16 %v245
        %v291 = vunpack.c.l.b16 %v246
        %v292 = vunpack.c.l.b16 %v247
        %v293 = vunpack.c.l.b16 %v248
        %v294 = vunpack.c.l.b16 %v249
        %v295 = vunpack.c.l.b16 %v250
        %v296 = vunpack.c.l.b16 %v251
        %v297 = vunpack.c.l.b16 %v252
        %v298 = vunpack.c.l.b16 %v253
        %v299 = vunpack.c.l.b16 %v254
        %v300 = vunpack.c.l.b16 %v255
        %v301 = vunpack.c.l.b16 %v256
        %v302 = vunpack.c.l.b16 %v257
        %v303 = vunpack.c.l.b16 %v258
        %v304 = vunpack.c.l.b16 %v259
        %v305 = vpack.c.b16 %v290, %v289
        %v306 = vpack.c.b16 %v292, %v291
        %v307 = vpack.c.b16 %v294, %v293
        %v308 = vpack.c.b16 %v296, %v295
        %v309 = vpack.c.b16 %v298, %v297
        %v310 = vpack.c.b16 %v300, %v299
        %v311 = vpack.c.b16 %v302, %v301
        %v312 = vpack.c.b16 %v304, %v303
        %321 = vmatprep.subr.bf16.mxu0 0
        %322 = vmatpush1.bf16.msra.mxu0 %v305
        %323 = vmatprep.subr.bf16.mxu0 0
        %324 = vmatpush1.bf16.msra.mxu0 %v306
        %325 = vmatprep.subr.bf16.mxu0 0
        %326 = vmatpush1.bf16.msra.mxu0 %v307
        %327 = vmatprep.subr.bf16.mxu0 0
        %328 = vmatpush1.bf16.msra.mxu0 %v308
        %329 = vmatprep.subr.bf16.mxu0 0
        %330 = vmatpush1.bf16.msra.mxu0 %v309
        %331 = vmatprep.subr.bf16.mxu0 0
        %332 = vmatpush1.bf16.msra.mxu0 %v310
        %333 = vmatprep.subr.bf16.mxu0 0
        %334 = vmatpush1.bf16.msra.mxu0 %v311
        %335 = vmatprep.subr.bf16.mxu0 0
        %336 = vmatpush1.bf16.msra.mxu0 %v312
        %337 = vmatprep.subr.bf16.mxu0 0
        %338 = vmatpush1.bf16.msra.mxu0 0
        %339 = vmatprep.subr.bf16.mxu0 0
        %340 = vmatpush1.bf16.msra.mxu0 0
        %341 = vmatprep.subr.bf16.mxu0 0
        %342 = vmatpush1.bf16.msra.mxu0 0
        %343 = vmatprep.subr.bf16.mxu0 0
        %344 = vmatpush1.bf16.msra.mxu0 0
        %345 = vmatprep.subr.bf16.mxu0 0
        %346 = vmatpush1.bf16.msra.mxu0 0
        %347 = vmatprep.subr.bf16.mxu0 0
        %348 = vmatpush1.bf16.msra.mxu0 0
        %349 = vmatprep.subr.bf16.mxu0 0
        %350 = vmatpush1.bf16.msra.mxu0 0
        %351 = vmatprep.subr.bf16.mxu0 0
        %352 = vmatpush1.bf16.msra.mxu0 0
        %353 = vmatprep.mubr.bf16.mxu0 0
        %354 = vmatmul.mubr.bf16.gmra.mrb[0].mxu0 %v271
        %v355 = vpop.f32.mrb[0].mxu0
        %v356 = vadd.f32 %v265, %v355
        %v357 = vpop.f32.mrb[0].mxu0
        %v358 = vpop.f32.mrb[0].mxu0
        %v359 = vadd.f32 %v265, %v358
        %v360 = vpop.f32.mrb[0].mxu0
        %361 = vdwg.mxu0
        %362 = vst [vmem:[%s235] sm:$0xff] %v356
        %363 = vst [vmem:[%s235 + $0x8] sm:$0xff] %v359
        %s364 = sand.u32 %s121, 1
        %s365 = scalar_lea.sflag [#allocation4], %s364
        %s366 = sand.u32 %s121, 1
        %s367 = smul.addr %s366, 16
        %s368 = scalar_lea.vmem [#allocation7], %s367
        // Predicated region
        $region41: #{tpu_custom_call.1} parent=31 // pred_check
          %p369 = pneg %p131
        $region42: #{tpu_custom_call.1} parent=31 // pred_check_branch
          %371 = sbr.rel (%p369) target = $region44
        $region43: #{tpu_custom_call.1} parent=31 // pred_region
          %s372 = smul.u32 2, %s25
          %s374 = ssub.s32 256, 256
          %375 = vsyncadd %s365, %s374
          %s376 = smul.addr %s372, 2
          %s377 = sadd.s32 %s26, %s376
          %s378 = smul.addr %s377, 128
          %s379 = scalar_lea.hbm %s3, %s378
          %s380 = sshll.u32 %s368, 4
          %s381 = int_to_ptr.vmem [resolvable:$true] %s380
          %386 = dma.vmem_to_hbm [thread:$0]  %s381, 256, %s379, %s365, 128, 256, 8
        $region44: #{tpu_custom_call.1} parent=31 // pred_fallthru
          _
      $region32: #{tpu_custom_call.1} parent=5 // pred_fallthru
        _
      %p387 = scmp.le.s32.totalorder 2, %s16
      // Predicated region
      $region45: #{tpu_custom_call.1} parent=5 // pred_check
        %p388 = pneg %p387
      $region46: #{tpu_custom_call.1} parent=5 // pred_check_branch
        %390 = sbr.rel (%p388) target = $region48
      $region47: #{tpu_custom_call.1} parent=5 // pred_region
        %s391 = ssub.s32 %s16, 2
        // Predicated region
        $region49: #{tpu_custom_call.1} parent=47 // pred_check
          %p392 = pneg %p137
        $region50: #{tpu_custom_call.1} parent=47 // pred_check_branch
          %394 = sbr.rel (%p392) target = $region52
        $region51: #{tpu_custom_call.1} parent=47 // pred_region
          %s395 = sand.u32 %s122, 1
          %s396 = scalar_lea.sflag [#allocation4], %s395
          %s397 = sand.u32 %s122, 1
          %s398 = smul.addr %s397, 16
          %s399 = scalar_lea.vmem [#allocation7], %s398
          %400 = dma.done %s396, 256
        $region52: #{tpu_custom_call.1} parent=47 // pred_fallthru
          _
      $region48: #{tpu_custom_call.1} parent=5 // pred_fallthru
        _
    $region6: #{tpu_custom_call.1} parent=1 // loop_footer
      %s20 = sadd.s32 1, %s16
    $region7: #{tpu_custom_call.1} parent=1 // loop_footer_branch
      %15 = sbr.rel target = $region3
    $region8: #{tpu_custom_call.1} parent=1 // loop_exit
      _
    %401 = vsyncpa [#allocation3], 1
    %s402 = scalar_lea.sflag [#allocation3], 1
    %403 = vsyncpa %s402, 1
    %404 = vsyncpa [#allocation6], 1
    %s405 = scalar_lea.sflag [#allocation6], 1
    %406 = vsyncpa %s405, 1
    %407 = vsyncpa [#allocation4], 1
    %s408 = scalar_lea.sflag [#allocation4], 1
    %409 = vsyncpa %s408, 1

</llo_original>
